<compile_context>
chip_gen: v5e
topology: v5e:2x2
jax: 0.10.0
libtpu: 0.0.40
codegen_flags: <defaults>
</compile_context>

<pallas_src>
import functools

import jax
import jax.numpy as jnp
from jax.experimental import pallas as pl
from jax.experimental.pallas import tpu as pltpu


def _lstm_kernel(x_ref, wih_ref, whh_ref, b_ref, wl_ref, bl_ref, out_ref, *, B, T):
    """Single-launch LSTM: input projection + unrolled recurrence + Linear head.

    x_ref  : (T*B, I)   time-major input rows (row = t*B + b)
    wih_ref: (I, 4H)    W_ih^T, gate order i|f|g|o along lanes
    whh_ref: (H, 4H)    W_hh^T, fused per-gate recurrent RHS (lane-dense)
    b_ref  : (1, 4H)    b_ih + b_hh
    wl_ref : (H, O)     linear weight^T
    bl_ref : (1, O)     linear bias
    out_ref: (B, O)     prediction at the last timestep
    """
    H = whh_ref.shape[0]

    # ---- hoisted, non-recurrent work: one MXU matmul off the serial path ----
    # (T*B, I) x (I, 4H) -> (T*B, 4H); lane-dense, fits in 2 vregs.
    xg = (jnp.dot(x_ref[...], wih_ref[...], preferred_element_type=jnp.float32)
          + b_ref[...])

    whh = whh_ref[...]                                   # (H, 4H), 4 vregs

    h = jnp.zeros((B, H), jnp.float32)
    c = jnp.zeros((B, H), jnp.float32)

    # Fully unrolled serial recurrence (T is small & static). Per step:
    #   * ONE full-lane (N = 4H = 128) MXU matmul for all four gates,
    #   * TWO full-width EUP pushes (sigmoid, tanh) + one tanh(c),
    #   * static 32-lane slices to separate gates (XLU lane shifts).
    for t in range(T):
        z = xg[t * B:(t + 1) * B, :] + jnp.dot(
            h, whh, preferred_element_type=jnp.float32)  # (B, 4H)
        sig = jax.nn.sigmoid(z)
        tah = jnp.tanh(z)
        gi = sig[:, 0 * H:1 * H]
        gf = sig[:, 1 * H:2 * H]
        gg = tah[:, 2 * H:3 * H]
        go = sig[:, 3 * H:4 * H]
        c = gf * c + gi * gg
        h = go * jnp.tanh(c)

    # Linear head on the last hidden state (== pred[:, -1, :] of the module).
    out_ref[...] = (jnp.dot(h, wl_ref[...], preferred_element_type=jnp.float32)
                    + bl_ref[...]).astype(out_ref.dtype)


@jax.jit
def lstm_forward(x, w_ih, w_hh, b_ih, b_hh, w_lin, b_lin):
    """x: (B, T, I). Returns pred of shape (B, output_size) (== pred[:, -1, :])."""
    B, T, I = x.shape
    H = w_hh.shape[1]
    O = w_lin.shape[0]
    f32 = jnp.float32

    # One-time, tiny layout prep (fused into the same jitted program).
    x_tm = jnp.swapaxes(x.astype(f32), 0, 1).reshape(T * B, I)   # time-major rows
    wih_t = jnp.asarray(w_ih.T, f32)                             # (I, 4H)
    whh_t = jnp.asarray(w_hh.T, f32)                             # (H, 4H) fused RHS
    b = (b_ih + b_hh).astype(f32).reshape(1, 4 * H)              # (1, 4H)
    wl_t = jnp.asarray(w_lin.T, f32)                             # (H, O)
    bl = b_lin.astype(f32).reshape(1, O)                         # (1, O)

    kernel = functools.partial(_lstm_kernel, B=B, T=T)

    return pl.pallas_call(
        kernel,
        out_shape=jax.ShapeDtypeStruct((B, O), f32),
        grid_spec=pltpu.PrefetchScalarGridSpec(
            num_scalar_prefetch=0,
            grid=(1,),                     # single launch: recurrence lives in-kernel
            in_specs=[
                pl.BlockSpec((T * B, I), lambda i: (0, 0)),
                pl.BlockSpec((I, 4 * H), lambda i: (0, 0)),
                pl.BlockSpec((H, 4 * H), lambda i: (0, 0)),
                pl.BlockSpec((1, 4 * H), lambda i: (0, 0)),
                pl.BlockSpec((H, O), lambda i: (0, 0)),
                pl.BlockSpec((1, O), lambda i: (0, 0)),
            ],
            out_specs=pl.BlockSpec((B, O), lambda i: (0, 0)),
        ),
        compiler_params=pltpu.CompilerParams(
            dimension_semantics=("arbitrary",)),   # serial recurrence; no cross-TC split
    )(x_tm, wih_t, whh_t, b, wl_t, bl)


def _reference(x, w_ih, w_hh, b_ih, b_hh, w_lin, b_lin):
    """Pure-JAX reference reproducing torch.nn.LSTM(batch_first=True) + Linear."""
    B, T, I = x.shape
    H = w_hh.shape[1]

    def step(carry, x_t):
        h, c = carry
        gates = x_t @ w_ih.T + b_ih + h @ w_hh.T + b_hh
        i_g = jax.nn.sigmoid(gates[:, 0 * H:1 * H])
        f_g = jax.nn.sigmoid(gates[:, 1 * H:2 * H])
        g_g = jnp.tanh(gates[:, 2 * H:3 * H])
        o_g = jax.nn.sigmoid(gates[:, 3 * H:4 * H])
        c_new = f_g * c + i_g * g_g
        h_new = o_g * jnp.tanh(c_new)
        return (h_new, c_new), h_new

    h0 = jnp.zeros((B, H), jnp.float32)
    c0 = jnp.zeros((B, H), jnp.float32)
    (h_T, _), _ = jax.lax.scan(step, (h0, c0), jnp.swapaxes(x, 0, 1))
    return h_T @ w_lin.T + b_lin


if __name__ == "__main__":
    # Module config: LSTM(input_size=16, hidden_size=32, output_size=8, batch_size=2)
    B, T, I, H, O = 2, 8, 16, 32, 8

    key = jax.random.PRNGKey(0)
    kx, k1, k2, k3, k4, k5, k6 = jax.random.split(key, 7)

    # Deterministic parameter init (uniform in [-1/sqrt(H), 1/sqrt(H)], like PyTorch).
    s = 1.0 / jnp.sqrt(jnp.float32(H))
    x = jax.random.normal(kx, (B, T, I), jnp.float32)
    w_ih = jax.random.uniform(k1, (4 * H, I), jnp.float32, -s, s)
    w_hh = jax.random.uniform(k2, (4 * H, H), jnp.float32, -s, s)
    b_ih = jax.random.uniform(k3, (4 * H,), jnp.float32, -s, s)
    b_hh = jax.random.uniform(k4, (4 * H,), jnp.float32, -s, s)
    w_lin = jax.random.uniform(k5, (O, H), jnp.float32, -s, s)
    b_lin = jax.random.uniform(k6, (O,), jnp.float32, -s, s)

    pred = lstm_forward(x, w_ih, w_hh, b_ih, b_hh, w_lin, b_lin)
    pred = jax.block_until_ready(pred)

    ref = _reference(x, w_ih, w_hh, b_ih, b_hh, w_lin, b_lin)
    assert pred.shape == (B, O)
    assert jnp.allclose(pred, ref, atol=2e-5, rtol=2e-5), "mismatch vs reference"

    print("KERNEL_OK")
</pallas_src>

<mosaic_0001>
module attributes {stable_mosaic.version = 11 : i64} {
  func.func @_lstm_kernel(%arg0: i32, %arg1: memref<16x16xf32, #tpu.memory_space<vmem>>, %arg2: memref<16x128xf32, #tpu.memory_space<vmem>>, %arg3: memref<32x128xf32, #tpu.memory_space<vmem>>, %arg4: memref<1x128xf32, #tpu.memory_space<vmem>>, %arg5: memref<32x8xf32, #tpu.memory_space<vmem>>, %arg6: memref<1x8xf32, #tpu.memory_space<vmem>>, %arg7: memref<2x8xf32, #tpu.memory_space<vmem>>) attributes {dimension_semantics = [#tpu.dimension_semantics<arbitrary>], iteration_bounds = array<i64: 1>, scalar_prefetch = 0 : i64, scratch_operands = 0 : i64, tpu.core_type = #tpu.core_type<tc>, window_params = [{pipeline_mode = #tpu.pipeline_mode<synchronous>, transform_indices = @transform_0, window_bounds = array<i64: 16, 16>}, {pipeline_mode = #tpu.pipeline_mode<synchronous>, transform_indices = @transform_1, window_bounds = array<i64: 16, 128>}, {pipeline_mode = #tpu.pipeline_mode<synchronous>, transform_indices = @transform_2, window_bounds = array<i64: 32, 128>}, {pipeline_mode = #tpu.pipeline_mode<synchronous>, transform_indices = @transform_3, window_bounds = array<i64: 1, 128>}, {pipeline_mode = #tpu.pipeline_mode<synchronous>, transform_indices = @transform_4, window_bounds = array<i64: 32, 8>}, {pipeline_mode = #tpu.pipeline_mode<synchronous>, transform_indices = @transform_5, window_bounds = array<i64: 1, 8>}, {pipeline_mode = #tpu.pipeline_mode<synchronous>, transform_indices = @transform_6, window_bounds = array<i64: 2, 8>}]} {
    %c0 = arith.constant 0 : index
    %c0_0 = arith.constant 0 : index
    %0 = vector.load %arg1[%c0, %c0_0] : memref<16x16xf32, #tpu.memory_space<vmem>>, vector<16x16xf32>
    %c0_1 = arith.constant 0 : index
    %c0_2 = arith.constant 0 : index
    %1 = vector.load %arg2[%c0_1, %c0_2] : memref<16x128xf32, #tpu.memory_space<vmem>>, vector<16x128xf32>
    %cst = arith.constant dense<0.000000e+00> : vector<16x128xf32>
    %2 = tpu.matmul %0, %1, %cst {dimension_numbers = #tpu.dot_dimension_numbers<[1], [0], [0], [1], [0, 0, 1, 1], [], []>} : vector<16x16xf32>, vector<16x128xf32>, vector<16x128xf32> -> vector<16x128xf32>
    %c0_3 = arith.constant 0 : index
    %c0_4 = arith.constant 0 : index
    %3 = vector.load %arg4[%c0_3, %c0_4] : memref<1x128xf32, #tpu.memory_space<vmem>>, vector<1x128xf32>
    %4 = vector.broadcast %3 : vector<1x128xf32> to vector<16x128xf32>
    %5 = arith.addf %2, %4 : vector<16x128xf32>
    %c0_5 = arith.constant 0 : index
    %c0_6 = arith.constant 0 : index
    %6 = vector.load %arg3[%c0_5, %c0_6] : memref<32x128xf32, #tpu.memory_space<vmem>>, vector<32x128xf32>
    %cst_7 = arith.constant 0.000000e+00 : f32
    %7 = vector.broadcast %cst_7 : f32 to vector<2x32xf32>
    %cst_8 = arith.constant 0.000000e+00 : f32
    %8 = vector.broadcast %cst_8 : f32 to vector<2x32xf32>
    %9 = vector.extract_strided_slice %5 {offsets = [0, 0], sizes = [2, 128], strides = [1, 1]} : vector<16x128xf32> to vector<2x128xf32>
    %cst_9 = arith.constant dense<0.000000e+00> : vector<2x128xf32>
    %10 = tpu.matmul %7, %6, %cst_9 {dimension_numbers = #tpu.dot_dimension_numbers<[1], [0], [0], [1], [0, 0, 1, 1], [], []>} : vector<2x32xf32>, vector<32x128xf32>, vector<2x128xf32> -> vector<2x128xf32>
    %11 = arith.addf %9, %10 : vector<2x128xf32>
    %12 = arith.negf %11 : vector<2x128xf32>
    %13 = math.exp %12 : vector<2x128xf32>
    %cst_10 = arith.constant 1.000000e+00 : f32
    %14 = vector.broadcast %cst_10 : f32 to vector<2x128xf32>
    %15 = arith.addf %14, %13 : vector<2x128xf32>
    %16 = arith.divf %14, %15 : vector<2x128xf32>
    %17 = math.tanh %11 : vector<2x128xf32>
    %18 = vector.extract_strided_slice %16 {offsets = [0, 0], sizes = [2, 32], strides = [1, 1]} : vector<2x128xf32> to vector<2x32xf32>
    %19 = vector.extract_strided_slice %16 {offsets = [0, 32], sizes = [2, 32], strides = [1, 1]} : vector<2x128xf32> to vector<2x32xf32>
    %20 = vector.extract_strided_slice %17 {offsets = [0, 64], sizes = [2, 32], strides = [1, 1]} : vector<2x128xf32> to vector<2x32xf32>
    %21 = vector.extract_strided_slice %16 {offsets = [0, 96], sizes = [2, 32], strides = [1, 1]} : vector<2x128xf32> to vector<2x32xf32>
    %22 = arith.mulf %19, %8 : vector<2x32xf32>
    %23 = arith.mulf %18, %20 : vector<2x32xf32>
    %24 = arith.addf %22, %23 : vector<2x32xf32>
    %25 = math.tanh %24 : vector<2x32xf32>
    %26 = arith.mulf %21, %25 : vector<2x32xf32>
    %27 = vector.extract_strided_slice %5 {offsets = [2, 0], sizes = [2, 128], strides = [1, 1]} : vector<16x128xf32> to vector<2x128xf32>
    %cst_11 = arith.constant dense<0.000000e+00> : vector<2x128xf32>
    %28 = tpu.matmul %26, %6, %cst_11 {dimension_numbers = #tpu.dot_dimension_numbers<[1], [0], [0], [1], [0, 0, 1, 1], [], []>} : vector<2x32xf32>, vector<32x128xf32>, vector<2x128xf32> -> vector<2x128xf32>
    %29 = arith.addf %27, %28 : vector<2x128xf32>
    %30 = arith.negf %29 : vector<2x128xf32>
    %31 = math.exp %30 : vector<2x128xf32>
    %cst_12 = arith.constant 1.000000e+00 : f32
    %32 = vector.broadcast %cst_12 : f32 to vector<2x128xf32>
    %33 = arith.addf %32, %31 : vector<2x128xf32>
    %34 = arith.divf %32, %33 : vector<2x128xf32>
    %35 = math.tanh %29 : vector<2x128xf32>
    %36 = vector.extract_strided_slice %34 {offsets = [0, 0], sizes = [2, 32], strides = [1, 1]} : vector<2x128xf32> to vector<2x32xf32>
    %37 = vector.extract_strided_slice %34 {offsets = [0, 32], sizes = [2, 32], strides = [1, 1]} : vector<2x128xf32> to vector<2x32xf32>
    %38 = vector.extract_strided_slice %35 {offsets = [0, 64], sizes = [2, 32], strides = [1, 1]} : vector<2x128xf32> to vector<2x32xf32>
    %39 = vector.extract_strided_slice %34 {offsets = [0, 96], sizes = [2, 32], strides = [1, 1]} : vector<2x128xf32> to vector<2x32xf32>
    %40 = arith.mulf %37, %24 : vector<2x32xf32>
    %41 = arith.mulf %36, %38 : vector<2x32xf32>
    %42 = arith.addf %40, %41 : vector<2x32xf32>
    %43 = math.tanh %42 : vector<2x32xf32>
    %44 = arith.mulf %39, %43 : vector<2x32xf32>
    %45 = vector.extract_strided_slice %5 {offsets = [4, 0], sizes = [2, 128], strides = [1, 1]} : vector<16x128xf32> to vector<2x128xf32>
    %cst_13 = arith.constant dense<0.000000e+00> : vector<2x128xf32>
    %46 = tpu.matmul %44, %6, %cst_13 {dimension_numbers = #tpu.dot_dimension_numbers<[1], [0], [0], [1], [0, 0, 1, 1], [], []>} : vector<2x32xf32>, vector<32x128xf32>, vector<2x128xf32> -> vector<2x128xf32>
    %47 = arith.addf %45, %46 : vector<2x128xf32>
    %48 = arith.negf %47 : vector<2x128xf32>
    %49 = math.exp %48 : vector<2x128xf32>
    %cst_14 = arith.constant 1.000000e+00 : f32
    %50 = vector.broadcast %cst_14 : f32 to vector<2x128xf32>
    %51 = arith.addf %50, %49 : vector<2x128xf32>
    %52 = arith.divf %50, %51 : vector<2x128xf32>
    %53 = math.tanh %47 : vector<2x128xf32>
    %54 = vector.extract_strided_slice %52 {offsets = [0, 0], sizes = [2, 32], strides = [1, 1]} : vector<2x128xf32> to vector<2x32xf32>
    %55 = vector.extract_strided_slice %52 {offsets = [0, 32], sizes = [2, 32], strides = [1, 1]} : vector<2x128xf32> to vector<2x32xf32>
    %56 = vector.extract_strided_slice %53 {offsets = [0, 64], sizes = [2, 32], strides = [1, 1]} : vector<2x128xf32> to vector<2x32xf32>
    %57 = vector.extract_strided_slice %52 {offsets = [0, 96], sizes = [2, 32], strides = [1, 1]} : vector<2x128xf32> to vector<2x32xf32>
    %58 = arith.mulf %55, %42 : vector<2x32xf32>
    %59 = arith.mulf %54, %56 : vector<2x32xf32>
    %60 = arith.addf %58, %59 : vector<2x32xf32>
    %61 = math.tanh %60 : vector<2x32xf32>
    %62 = arith.mulf %57, %61 : vector<2x32xf32>
    %63 = vector.extract_strided_slice %5 {offsets = [6, 0], sizes = [2, 128], strides = [1, 1]} : vector<16x128xf32> to vector<2x128xf32>
    %cst_15 = arith.constant dense<0.000000e+00> : vector<2x128xf32>
    %64 = tpu.matmul %62, %6, %cst_15 {dimension_numbers = #tpu.dot_dimension_numbers<[1], [0], [0], [1], [0, 0, 1, 1], [], []>} : vector<2x32xf32>, vector<32x128xf32>, vector<2x128xf32> -> vector<2x128xf32>
    %65 = arith.addf %63, %64 : vector<2x128xf32>
    %66 = arith.negf %65 : vector<2x128xf32>
    %67 = math.exp %66 : vector<2x128xf32>
    %cst_16 = arith.constant 1.000000e+00 : f32
    %68 = vector.broadcast %cst_16 : f32 to vector<2x128xf32>
    %69 = arith.addf %68, %67 : vector<2x128xf32>
    %70 = arith.divf %68, %69 : vector<2x128xf32>
    %71 = math.tanh %65 : vector<2x128xf32>
    %72 = vector.extract_strided_slice %70 {offsets = [0, 0], sizes = [2, 32], strides = [1, 1]} : vector<2x128xf32> to vector<2x32xf32>
    %73 = vector.extract_strided_slice %70 {offsets = [0, 32], sizes = [2, 32], strides = [1, 1]} : vector<2x128xf32> to vector<2x32xf32>
    %74 = vector.extract_strided_slice %71 {offsets = [0, 64], sizes = [2, 32], strides = [1, 1]} : vector<2x128xf32> to vector<2x32xf32>
    %75 = vector.extract_strided_slice %70 {offsets = [0, 96], sizes = [2, 32], strides = [1, 1]} : vector<2x128xf32> to vector<2x32xf32>
    %76 = arith.mulf %73, %60 : vector<2x32xf32>
    %77 = arith.mulf %72, %74 : vector<2x32xf32>
    %78 = arith.addf %76, %77 : vector<2x32xf32>
    %79 = math.tanh %78 : vector<2x32xf32>
    %80 = arith.mulf %75, %79 : vector<2x32xf32>
    %81 = vector.extract_strided_slice %5 {offsets = [8, 0], sizes = [2, 128], strides = [1, 1]} : vector<16x128xf32> to vector<2x128xf32>
    %cst_17 = arith.constant dense<0.000000e+00> : vector<2x128xf32>
    %82 = tpu.matmul %80, %6, %cst_17 {dimension_numbers = #tpu.dot_dimension_numbers<[1], [0], [0], [1], [0, 0, 1, 1], [], []>} : vector<2x32xf32>, vector<32x128xf32>, vector<2x128xf32> -> vector<2x128xf32>
    %83 = arith.addf %81, %82 : vector<2x128xf32>
    %84 = arith.negf %83 : vector<2x128xf32>
    %85 = math.exp %84 : vector<2x128xf32>
    %cst_18 = arith.constant 1.000000e+00 : f32
    %86 = vector.broadcast %cst_18 : f32 to vector<2x128xf32>
    %87 = arith.addf %86, %85 : vector<2x128xf32>
    %88 = arith.divf %86, %87 : vector<2x128xf32>
    %89 = math.tanh %83 : vector<2x128xf32>
    %90 = vector.extract_strided_slice %88 {offsets = [0, 0], sizes = [2, 32], strides = [1, 1]} : vector<2x128xf32> to vector<2x32xf32>
    %91 = vector.extract_strided_slice %88 {offsets = [0, 32], sizes = [2, 32], strides = [1, 1]} : vector<2x128xf32> to vector<2x32xf32>
    %92 = vector.extract_strided_slice %89 {offsets = [0, 64], sizes = [2, 32], strides = [1, 1]} : vector<2x128xf32> to vector<2x32xf32>
    %93 = vector.extract_strided_slice %88 {offsets = [0, 96], sizes = [2, 32], strides = [1, 1]} : vector<2x128xf32> to vector<2x32xf32>
    %94 = arith.mulf %91, %78 : vector<2x32xf32>
    %95 = arith.mulf %90, %92 : vector<2x32xf32>
    %96 = arith.addf %94, %95 : vector<2x32xf32>
    %97 = math.tanh %96 : vector<2x32xf32>
    %98 = arith.mulf %93, %97 : vector<2x32xf32>
    %99 = vector.extract_strided_slice %5 {offsets = [10, 0], sizes = [2, 128], strides = [1, 1]} : vector<16x128xf32> to vector<2x128xf32>
    %cst_19 = arith.constant dense<0.000000e+00> : vector<2x128xf32>
    %100 = tpu.matmul %98, %6, %cst_19 {dimension_numbers = #tpu.dot_dimension_numbers<[1], [0], [0], [1], [0, 0, 1, 1], [], []>} : vector<2x32xf32>, vector<32x128xf32>, vector<2x128xf32> -> vector<2x128xf32>
    %101 = arith.addf %99, %100 : vector<2x128xf32>
    %102 = arith.negf %101 : vector<2x128xf32>
    %103 = math.exp %102 : vector<2x128xf32>
    %cst_20 = arith.constant 1.000000e+00 : f32
    %104 = vector.broadcast %cst_20 : f32 to vector<2x128xf32>
    %105 = arith.addf %104, %103 : vector<2x128xf32>
    %106 = arith.divf %104, %105 : vector<2x128xf32>
    %107 = math.tanh %101 : vector<2x128xf32>
    %108 = vector.extract_strided_slice %106 {offsets = [0, 0], sizes = [2, 32], strides = [1, 1]} : vector<2x128xf32> to vector<2x32xf32>
    %109 = vector.extract_strided_slice %106 {offsets = [0, 32], sizes = [2, 32], strides = [1, 1]} : vector<2x128xf32> to vector<2x32xf32>
    %110 = vector.extract_strided_slice %107 {offsets = [0, 64], sizes = [2, 32], strides = [1, 1]} : vector<2x128xf32> to vector<2x32xf32>
    %111 = vector.extract_strided_slice %106 {offsets = [0, 96], sizes = [2, 32], strides = [1, 1]} : vector<2x128xf32> to vector<2x32xf32>
    %112 = arith.mulf %109, %96 : vector<2x32xf32>
    %113 = arith.mulf %108, %110 : vector<2x32xf32>
    %114 = arith.addf %112, %113 : vector<2x32xf32>
    %115 = math.tanh %114 : vector<2x32xf32>
    %116 = arith.mulf %111, %115 : vector<2x32xf32>
    %117 = vector.extract_strided_slice %5 {offsets = [12, 0], sizes = [2, 128], strides = [1, 1]} : vector<16x128xf32> to vector<2x128xf32>
    %cst_21 = arith.constant dense<0.000000e+00> : vector<2x128xf32>
    %118 = tpu.matmul %116, %6, %cst_21 {dimension_numbers = #tpu.dot_dimension_numbers<[1], [0], [0], [1], [0, 0, 1, 1], [], []>} : vector<2x32xf32>, vector<32x128xf32>, vector<2x128xf32> -> vector<2x128xf32>
    %119 = arith.addf %117, %118 : vector<2x128xf32>
    %120 = arith.negf %119 : vector<2x128xf32>
    %121 = math.exp %120 : vector<2x128xf32>
    %cst_22 = arith.constant 1.000000e+00 : f32
    %122 = vector.broadcast %cst_22 : f32 to vector<2x128xf32>
    %123 = arith.addf %122, %121 : vector<2x128xf32>
    %124 = arith.divf %122, %123 : vector<2x128xf32>
    %125 = math.tanh %119 : vector<2x128xf32>
    %126 = vector.extract_strided_slice %124 {offsets = [0, 0], sizes = [2, 32], strides = [1, 1]} : vector<2x128xf32> to vector<2x32xf32>
    %127 = vector.extract_strided_slice %124 {offsets = [0, 32], sizes = [2, 32], strides = [1, 1]} : vector<2x128xf32> to vector<2x32xf32>
    %128 = vector.extract_strided_slice %125 {offsets = [0, 64], sizes = [2, 32], strides = [1, 1]} : vector<2x128xf32> to vector<2x32xf32>
    %129 = vector.extract_strided_slice %124 {offsets = [0, 96], sizes = [2, 32], strides = [1, 1]} : vector<2x128xf32> to vector<2x32xf32>
    %130 = arith.mulf %127, %114 : vector<2x32xf32>
    %131 = arith.mulf %126, %128 : vector<2x32xf32>
    %132 = arith.addf %130, %131 : vector<2x32xf32>
    %133 = math.tanh %132 : vector<2x32xf32>
    %134 = arith.mulf %129, %133 : vector<2x32xf32>
    %135 = vector.extract_strided_slice %5 {offsets = [14, 0], sizes = [2, 128], strides = [1, 1]} : vector<16x128xf32> to vector<2x128xf32>
    %cst_23 = arith.constant dense<0.000000e+00> : vector<2x128xf32>
    %136 = tpu.matmul %134, %6, %cst_23 {dimension_numbers = #tpu.dot_dimension_numbers<[1], [0], [0], [1], [0, 0, 1, 1], [], []>} : vector<2x32xf32>, vector<32x128xf32>, vector<2x128xf32> -> vector<2x128xf32>
    %137 = arith.addf %135, %136 : vector<2x128xf32>
    %138 = arith.negf %137 : vector<2x128xf32>
    %139 = math.exp %138 : vector<2x128xf32>
    %cst_24 = arith.constant 1.000000e+00 : f32
    %140 = vector.broadcast %cst_24 : f32 to vector<2x128xf32>
    %141 = arith.addf %140, %139 : vector<2x128xf32>
    %142 = arith.divf %140, %141 : vector<2x128xf32>
    %143 = math.tanh %137 : vector<2x128xf32>
    %144 = vector.extract_strided_slice %142 {offsets = [0, 0], sizes = [2, 32], strides = [1, 1]} : vector<2x128xf32> to vector<2x32xf32>
    %145 = vector.extract_strided_slice %142 {offsets = [0, 32], sizes = [2, 32], strides = [1, 1]} : vector<2x128xf32> to vector<2x32xf32>
    %146 = vector.extract_strided_slice %143 {offsets = [0, 64], sizes = [2, 32], strides = [1, 1]} : vector<2x128xf32> to vector<2x32xf32>
    %147 = vector.extract_strided_slice %142 {offsets = [0, 96], sizes = [2, 32], strides = [1, 1]} : vector<2x128xf32> to vector<2x32xf32>
    %148 = arith.mulf %145, %132 : vector<2x32xf32>
    %149 = arith.mulf %144, %146 : vector<2x32xf32>
    %150 = arith.addf %148, %149 : vector<2x32xf32>
    %151 = math.tanh %150 : vector<2x32xf32>
    %152 = arith.mulf %147, %151 : vector<2x32xf32>
    %c0_25 = arith.constant 0 : index
    %c0_26 = arith.constant 0 : index
    %153 = vector.load %arg5[%c0_25, %c0_26] : memref<32x8xf32, #tpu.memory_space<vmem>>, vector<32x8xf32>
    %cst_27 = arith.constant dense<0.000000e+00> : vector<2x8xf32>
    %154 = tpu.matmul %152, %153, %cst_27 {dimension_numbers = #tpu.dot_dimension_numbers<[1], [0], [0], [1], [0, 0, 1, 1], [], []>} : vector<2x32xf32>, vector<32x8xf32>, vector<2x8xf32> -> vector<2x8xf32>
    %c0_28 = arith.constant 0 : index
    %c0_29 = arith.constant 0 : index
    %155 = vector.load %arg6[%c0_28, %c0_29] : memref<1x8xf32, #tpu.memory_space<vmem>>, vector<1x8xf32>
    %156 = vector.broadcast %155 : vector<1x8xf32> to vector<2x8xf32>
    %157 = arith.addf %154, %156 : vector<2x8xf32>
    %c0_30 = arith.constant 0 : index
    %c0_31 = arith.constant 0 : index
    %158 = vector.load %arg7[%c0_30, %c0_31] : memref<2x8xf32, #tpu.memory_space<vmem>>, vector<2x8xf32>
    tpu.vector_store %arg7[%c0_30, %c0_31], %157 {strides = array<i32>} : memref<2x8xf32, #tpu.memory_space<vmem>>, vector<2x8xf32>,
    return
  }
  func.func @transform_0(%arg0: i32) -> (i32, i32) {
    %c0_i32 = arith.constant 0 : i32
    %c0_i32_0 = arith.constant 0 : i32
    %c0_i32_1 = arith.constant 0 : i32
    return %c0_i32, %c0_i32_0 : i32, i32
  }
  func.func @transform_1(%arg0: i32) -> (i32, i32) {
    %c0_i32 = arith.constant 0 : i32
    %c0_i32_0 = arith.constant 0 : i32
    %c0_i32_1 = arith.constant 0 : i32
    return %c0_i32, %c0_i32_0 : i32, i32
  }
  func.func @transform_2(%arg0: i32) -> (i32, i32) {
    %c0_i32 = arith.constant 0 : i32
    %c0_i32_0 = arith.constant 0 : i32
    %c0_i32_1 = arith.constant 0 : i32
    return %c0_i32, %c0_i32_0 : i32, i32
  }
  func.func @transform_3(%arg0: i32) -> (i32, i32) {
    %c0_i32 = arith.constant 0 : i32
    %c0_i32_0 = arith.constant 0 : i32
    %c0_i32_1 = arith.constant 0 : i32
    return %c0_i32, %c0_i32_0 : i32, i32
  }
  func.func @transform_4(%arg0: i32) -> (i32, i32) {
    %c0_i32 = arith.constant 0 : i32
    %c0_i32_0 = arith.constant 0 : i32
    %c0_i32_1 = arith.constant 0 : i32
    return %c0_i32, %c0_i32_0 : i32, i32
  }
  func.func @transform_5(%arg0: i32) -> (i32, i32) {
    %c0_i32 = arith.constant 0 : i32
    %c0_i32_0 = arith.constant 0 : i32
    %c0_i32_1 = arith.constant 0 : i32
    return %c0_i32, %c0_i32_0 : i32, i32
  }
  func.func @transform_6(%arg0: i32) -> (i32, i32) {
    %c0_i32 = arith.constant 0 : i32
    %c0_i32_0 = arith.constant 0 : i32
    %c0_i32_1 = arith.constant 0 : i32
    return %c0_i32, %c0_i32_0 : i32, i32
  }
}

</mosaic_0001>

<llo_original>
// kernel: lstm_forward.1
$region0: #{lstm_forward.1}
  #allocation0 [shape = 'u32[]', space=smem, size = 0x4, offset = 0x4, fixed_abs, tag = 'smem constant byte address 0x4 - core index']
  #allocation1 [shape = 'u32[72,128]{1,0:T(1,128)}', space=vmem, size = 0x9000, scoped, tag = 'internal scratch']
  %s0 = inlined_call_operand.vmem [shape: f32[16,16], index: 0, kind: input, shape index: {}]
  %s1 = inlined_call_operand.vmem [shape: f32[16,128], index: 1, kind: input, shape index: {}]
  %s2 = inlined_call_operand.vmem [shape: f32[32,128], index: 2, kind: input, shape index: {}]
  %s3 = inlined_call_operand.vmem [shape: f32[1,128], index: 3, kind: input, shape index: {}]
  %s4 = inlined_call_operand.vmem [shape: f32[32,8], index: 4, kind: input, shape index: {}]
  %s5 = inlined_call_operand.vmem [shape: f32[1,8], index: 5, kind: input, shape index: {}]
  %s6 = inlined_call_operand.hbm [shape: f32[2,8], index: 6, kind: output, shape index: {}]
  %s7 = sld [smem:[#allocation0]]
  $region34: #{lstm_forward.1} parent=0
    _
  %s9 = ssub.s32 1, %s7
  %s10 = scalar_select 0, %s9, %s7
  $region1: #{lstm_forward.1} parent=0
    #allocation2 [shape = 'u8[1024]{0}', space=vmem, size = 0x400, scoped, tag = 'output window, operand 0, single buffered']
    #allocation3 [shape = 's32[1]{0}', space=sflag, size = 0x4, scoped, tag = 'scoped memory for lstm_forward.1']
    %11 = vsyncpa [#allocation3], 0
    // Predicated region
    $region2: #{lstm_forward.1} parent=1 // pred_check
      _
    $region3: #{lstm_forward.1} parent=1 // pred_check_branch
      %13 = sbr.rel (0) target = $region5
    $region4: #{lstm_forward.1} parent=1 // pred_region
      _
    $region5: #{lstm_forward.1} parent=1 // pred_fallthru
      _
    // Predicated region
    $region6: #{lstm_forward.1} parent=1 // pred_check
      _
    $region7: #{lstm_forward.1} parent=1 // pred_check_branch
      %15 = sbr.rel (0) target = $region9
    $region8: #{lstm_forward.1} parent=1 // pred_region
      _
    $region9: #{lstm_forward.1} parent=1 // pred_fallthru
      _
    // Predicated region
    $region10: #{lstm_forward.1} parent=1 // pred_check
      _
    $region11: #{lstm_forward.1} parent=1 // pred_check_branch
      %17 = sbr.rel (0) target = $region13
    $region12: #{lstm_forward.1} parent=1 // pred_region
      _
    $region13: #{lstm_forward.1} parent=1 // pred_fallthru
      _
    // Predicated region
    $region14: #{lstm_forward.1} parent=1 // pred_check
      _
    $region15: #{lstm_forward.1} parent=1 // pred_check_branch
      %19 = sbr.rel (0) target = $region17
    $region16: #{lstm_forward.1} parent=1 // pred_region
      _
    $region17: #{lstm_forward.1} parent=1 // pred_fallthru
      _
    // Predicated region
    $region18: #{lstm_forward.1} parent=1 // pred_check
      _
    $region19: #{lstm_forward.1} parent=1 // pred_check_branch
      %21 = sbr.rel (0) target = $region21
    $region20: #{lstm_forward.1} parent=1 // pred_region
      _
    $region21: #{lstm_forward.1} parent=1 // pred_fallthru
      _
    // Predicated region
    $region22: #{lstm_forward.1} parent=1 // pred_check
      _
    $region23: #{lstm_forward.1} parent=1 // pred_check_branch
      %23 = sbr.rel (0) target = $region25
    $region24: #{lstm_forward.1} parent=1 // pred_region
      _
    $region25: #{lstm_forward.1} parent=1 // pred_fallthru
      _
    %v24 = vld [vmem:[%s0] sm:$0xff]
    %v25 = vld [vmem:[%s0 + $0x8] sm:$0xff]
    %v26 = vld [vmem:[%s1] sm:$0xff]
    %v27 = vld [vmem:[%s1 + $0x8] sm:$0xff]
    %v28 = vld [vmem:[%s3] sm:$0x1]
    %v30 = vperm.slane %v28, 0
    %vm32 = vcmask 130048
    %v34 = vsel %vm32, %v24, 0
    %v37 = vsel %vm32, %v25, 0
    %39 = vmatpush.msra.mxu0 0.0
    %40 = vmatpush.msra.mxu0 0.0
    %41 = vmatpush.msra.mxu0 0.0
    %42 = vmatpush.msra.mxu0 0.0
    %43 = vmatpush.msra.mxu0 0.0
    %44 = vmatpush.msra.mxu0 0.0
    %45 = vmatpush.msra.mxu0 0.0
    %46 = vmatpush.msra.mxu0 0.0
    %47 = vmatpush.msra.mxu0 0.0
    %48 = vmatpush.msra.mxu0 0.0
    %49 = vmatpush.msra.mxu0 0.0
    %50 = vmatpush.msra.mxu0 0.0
    %51 = vmatpush.msra.mxu0 0.0
    %52 = vmatpush.msra.mxu0 0.0
    %53 = vmatpush.msra.mxu0 %v27
    %54 = vmatpush.msra.mxu0 %v26
    %55 = vmatmul.f32.gmra.mxu0 %v34
    %v56 = vpop.f32.mrf.mxu0
    %v57 = vadd.f32 %v30, %v56
    %58 = vmatmul.f32.gmra.mxu0 %v37
    %v59 = vpop.f32.mrf.mxu0
    %v60 = vadd.f32 %v30, %v59
    %61 = vdwg.mxu0
    %v62 = vld [vmem:[%s2] sm:$0xff]
    %v63 = vld [vmem:[%s2 + $0x8] sm:$0xff]
    %v64 = vld [vmem:[%s2 + $0x10] sm:$0xff]
    %v65 = vld [vmem:[%s2 + $0x18] sm:$0xff]
    %vm66 = vcmask 261120
    %v68 = vsel %vm66, 0.0, 0
    %70 = vmatpush.msra.mxu0 0.0
    %71 = vmatpush.msra.mxu0 0.0
    %72 = vmatpush.msra.mxu0 0.0
    %73 = vmatpush.msra.mxu0 0.0
    %74 = vmatpush.msra.mxu0 0.0
    %75 = vmatpush.msra.mxu0 0.0
    %76 = vmatpush.msra.mxu0 0.0
    %77 = vmatpush.msra.mxu0 0.0
    %78 = vmatpush.msra.mxu0 0.0
    %79 = vmatpush.msra.mxu0 0.0
    %80 = vmatpush.msra.mxu0 0.0
    %81 = vmatpush.msra.mxu0 0.0
    %82 = vmatpush.msra.mxu0 %v65
    %83 = vmatpush.msra.mxu0 %v64
    %84 = vmatpush.msra.mxu0 %v63
    %85 = vmatpush.msra.mxu0 %v62
    %86 = vmatmul.f32.gmra.mxu0 %v68
    %v87 = vpop.f32.mrf.mxu0
    %v88 = vadd.f32 0.0, %v87
    %89 = vdwg.mxu0
    %v90 = vadd.f32 %v57, %v88
    %v91 = vxor.u32 %v90, 2147483648
    %v92 = vmul.f32 %v91, 1.442695
    %v93 = vpow.pop %v92
    %v94 = vadd.f32 %v93, 1.0
    %v95 = vrcp.pop %v94
    %v96 = vmul.f32 %v94, %v95
    %v97 = vsub.f32 1.0, %v96
    %v98 = vmul.f32 %v95, %v97
    %v99 = vadd.f32 %v95, %v98
    %vm100 = vweird.f32 %v94
    %vm101 = vweird.f32 %v95
    %vm102 = vmor %vm100, %vm101
    %v103 = vsel %vm102, %v95, %v99
    %v104 = vand.u32 2147483647, %v94
    %vm105 = vcmp.eq.f32.partialorder %v104, 8.507059e+37
    %v106 = vand.u32 %v94, 2147483648
    %v107 = vor.u32 1.1754944e-38, %v106
    %v108 = vsel %vm105, %v107, %v103
    %v109 = vmul.f32 1.0, %v108
    %v110 = vtanh.pop %v90
    %v111 = vmul.f32 %v109, 0.0
    %113 = vrot.lane.b32.xlu0 %v110, 64
    %v114 = vpop.permute.xlu0 %113
    %v116 = vmul.f32 %v109, %v114
    %118 = vrot.lane.b32.xlu0 %v116, 32
    %v119 = vpop.permute.xlu0 %118
    %v121 = vadd.f32 %v111, %v119
    %v122 = vtanh.pop %v121
    %124 = vrot.lane.b32.xlu0 %v122, 64
    %v125 = vpop.permute.xlu0 %124
    %v127 = vmul.f32 %v109, %v125
    %129 = vrot.lane.b32.xlu0 %v127, 32
    %v130 = vpop.permute.xlu0 %129
    %v131 = vsel %vm66, %v130, 0
    %133 = vmatpush.msra.mxu0 0.0
    %134 = vmatpush.msra.mxu0 0.0
    %135 = vmatpush.msra.mxu0 0.0
    %136 = vmatpush.msra.mxu0 0.0
    %137 = vmatpush.msra.mxu0 0.0
    %138 = vmatpush.msra.mxu0 0.0
    %139 = vmatpush.msra.mxu0 0.0
    %140 = vmatpush.msra.mxu0 0.0
    %141 = vmatpush.msra.mxu0 0.0
    %142 = vmatpush.msra.mxu0 0.0
    %143 = vmatpush.msra.mxu0 0.0
    %144 = vmatpush.msra.mxu0 0.0
    %145 = vmatpush.msra.mxu0 %v65
    %146 = vmatpush.msra.mxu0 %v64
    %147 = vmatpush.msra.mxu0 %v63
    %148 = vmatpush.msra.mxu0 %v62
    %149 = vmatmul.f32.gmra.mxu0 %v131
    %v150 = vpop.f32.mrf.mxu0
    %v151 = vadd.f32 0.0, %v150
    %152 = vdwg.mxu0
    %v154 = vrot.slane %v151, 6
    %v156 = vadd.f32 %v57, %v154
    %v157 = vxor.u32 %v156, 2147483648
    %v158 = vmul.f32 %v157, 1.442695
    %v159 = vpow.pop %v158
    %v160 = vadd.f32 %v159, 1.0
    %v161 = vrcp.pop %v160
    %v162 = vmul.f32 %v160, %v161
    %v163 = vsub.f32 1.0, %v162
    %v164 = vmul.f32 %v161, %v163
    %v165 = vadd.f32 %v161, %v164
    %vm166 = vweird.f32 %v160
    %vm167 = vweird.f32 %v161
    %vm168 = vmor %vm166, %vm167
    %v169 = vsel %vm168, %v161, %v165
    %v170 = vand.u32 2147483647, %v160
    %vm171 = vcmp.eq.f32.partialorder %v170, 8.507059e+37
    %v172 = vand.u32 %v160, 2147483648
    %v173 = vor.u32 1.1754944e-38, %v172
    %v174 = vsel %vm171, %v173, %v169
    %v175 = vmul.f32 1.0, %v174
    %v176 = vtanh.pop %v156
    %v178 = vrot.slane %v121, 6
    %v180 = vmul.f32 %v175, %v178
    %182 = vrot.lane.b32.xlu0 %v176, 64
    %v183 = vpop.permute.xlu0 %182
    %v185 = vmul.f32 %v175, %v183
    %187 = vrot.lane.b32.xlu0 %v185, 32
    %v188 = vpop.permute.xlu0 %187
    %v190 = vadd.f32 %v180, %v188
    %v191 = vtanh.pop %v190
    %193 = vrot.lane.b32.xlu0 %v191, 64
    %v194 = vpop.permute.xlu0 %193
    %v196 = vmul.f32 %v175, %v194
    %v198 = vrot.slane %v196, 2
    %199 = vrot.lane.b32.xlu0 %v198, 32
    %v200 = vpop.permute.xlu0 %199
    %v201 = vsel %vm66, %v200, 0
    %203 = vmatpush.msra.mxu0 0.0
    %204 = vmatpush.msra.mxu0 0.0
    %205 = vmatpush.msra.mxu0 0.0
    %206 = vmatpush.msra.mxu0 0.0
    %207 = vmatpush.msra.mxu0 0.0
    %208 = vmatpush.msra.mxu0 0.0
    %209 = vmatpush.msra.mxu0 0.0
    %210 = vmatpush.msra.mxu0 0.0
    %211 = vmatpush.msra.mxu0 0.0
    %212 = vmatpush.msra.mxu0 0.0
    %213 = vmatpush.msra.mxu0 0.0
    %214 = vmatpush.msra.mxu0 0.0
    %215 = vmatpush.msra.mxu0 %v65
    %216 = vmatpush.msra.mxu0 %v64
    %217 = vmatpush.msra.mxu0 %v63
    %218 = vmatpush.msra.mxu0 %v62
    %219 = vmatmul.f32.gmra.mxu0 %v201
    %v220 = vpop.f32.mrf.mxu0
    %v221 = vadd.f32 0.0, %v220
    %222 = vdwg.mxu0
    %v224 = vrot.slane %v221, 4
    %v226 = vadd.f32 %v57, %v224
    %v227 = vxor.u32 %v226, 2147483648
    %v228 = vmul.f32 %v227, 1.442695
    %v229 = vpow.pop %v228
    %v230 = vadd.f32 %v229, 1.0
    %v231 = vrcp.pop %v230
    %v232 = vmul.f32 %v230, %v231
    %v233 = vsub.f32 1.0, %v232
    %v234 = vmul.f32 %v231, %v233
    %v235 = vadd.f32 %v231, %v234
    %vm236 = vweird.f32 %v230
    %vm237 = vweird.f32 %v231
    %vm238 = vmor %vm236, %vm237
    %v239 = vsel %vm238, %v231, %v235
    %v240 = vand.u32 2147483647, %v230
    %vm241 = vcmp.eq.f32.partialorder %v240, 8.507059e+37
    %v242 = vand.u32 %v230, 2147483648
    %v243 = vor.u32 1.1754944e-38, %v242
    %v244 = vsel %vm241, %v243, %v239
    %v245 = vmul.f32 1.0, %v244
    %v246 = vtanh.pop %v226
    %v248 = vrot.slane %v190, 6
    %v250 = vmul.f32 %v245, %v248
    %252 = vrot.lane.b32.xlu0 %v246, 64
    %v253 = vpop.permute.xlu0 %252
    %v255 = vmul.f32 %v245, %v253
    %257 = vrot.lane.b32.xlu0 %v255, 32
    %v258 = vpop.permute.xlu0 %257
    %v260 = vadd.f32 %v250, %v258
    %v261 = vtanh.pop %v260
    %263 = vrot.lane.b32.xlu0 %v261, 64
    %v264 = vpop.permute.xlu0 %263
    %v266 = vmul.f32 %v245, %v264
    %v268 = vrot.slane %v266, 4
    %269 = vrot.lane.b32.xlu0 %v268, 32
    %v270 = vpop.permute.xlu0 %269
    %v271 = vsel %vm66, %v270, 0
    %273 = vmatpush.msra.mxu0 0.0
    %274 = vmatpush.msra.mxu0 0.0
    %275 = vmatpush.msra.mxu0 0.0
    %276 = vmatpush.msra.mxu0 0.0
    %277 = vmatpush.msra.mxu0 0.0
    %278 = vmatpush.msra.mxu0 0.0
    %279 = vmatpush.msra.mxu0 0.0
    %280 = vmatpush.msra.mxu0 0.0
    %281 = vmatpush.msra.mxu0 0.0
    %282 = vmatpush.msra.mxu0 0.0
    %283 = vmatpush.msra.mxu0 0.0
    %284 = vmatpush.msra.mxu0 0.0
    %285 = vmatpush.msra.mxu0 %v65
    %286 = vmatpush.msra.mxu0 %v64
    %287 = vmatpush.msra.mxu0 %v63
    %288 = vmatpush.msra.mxu0 %v62
    %289 = vmatmul.f32.gmra.mxu0 %v271
    %v290 = vpop.f32.mrf.mxu0
    %v291 = vadd.f32 0.0, %v290
    %292 = vdwg.mxu0
    %v294 = vrot.slane %v291, 2
    %v296 = vadd.f32 %v57, %v294
    %v297 = vxor.u32 %v296, 2147483648
    %v298 = vmul.f32 %v297, 1.442695
    %v299 = vpow.pop %v298
    %v300 = vadd.f32 %v299, 1.0
    %v301 = vrcp.pop %v300
    %v302 = vmul.f32 %v300, %v301
    %v303 = vsub.f32 1.0, %v302
    %v304 = vmul.f32 %v301, %v303
    %v305 = vadd.f32 %v301, %v304
    %vm306 = vweird.f32 %v300
    %vm307 = vweird.f32 %v301
    %vm308 = vmor %vm306, %vm307
    %v309 = vsel %vm308, %v301, %v305
    %v310 = vand.u32 2147483647, %v300
    %vm311 = vcmp.eq.f32.partialorder %v310, 8.507059e+37
    %v312 = vand.u32 %v300, 2147483648
    %v313 = vor.u32 1.1754944e-38, %v312
    %v314 = vsel %vm311, %v313, %v309
    %v315 = vmul.f32 1.0, %v314
    %v316 = vtanh.pop %v296
    %v318 = vrot.slane %v260, 6
    %v320 = vmul.f32 %v315, %v318
    %322 = vrot.lane.b32.xlu0 %v316, 64
    %v323 = vpop.permute.xlu0 %322
    %v325 = vmul.f32 %v315, %v323
    %327 = vrot.lane.b32.xlu0 %v325, 32
    %v328 = vpop.permute.xlu0 %327
    %v330 = vadd.f32 %v320, %v328
    %v331 = vtanh.pop %v330
    %333 = vrot.lane.b32.xlu0 %v331, 64
    %v334 = vpop.permute.xlu0 %333
    %v336 = vmul.f32 %v315, %v334
    %v338 = vrot.slane %v336, 6
    %339 = vrot.lane.b32.xlu0 %v338, 32
    %v340 = vpop.permute.xlu0 %339
    %v341 = vsel %vm66, %v340, 0
    %343 = vmatpush.msra.mxu0 0.0
    %344 = vmatpush.msra.mxu0 0.0
    %345 = vmatpush.msra.mxu0 0.0
    %346 = vmatpush.msra.mxu0 0.0
    %347 = vmatpush.msra.mxu0 0.0
    %348 = vmatpush.msra.mxu0 0.0
    %349 = vmatpush.msra.mxu0 0.0
    %350 = vmatpush.msra.mxu0 0.0
    %351 = vmatpush.msra.mxu0 0.0
    %352 = vmatpush.msra.mxu0 0.0
    %353 = vmatpush.msra.mxu0 0.0
    %354 = vmatpush.msra.mxu0 0.0
    %355 = vmatpush.msra.mxu0 %v65
    %356 = vmatpush.msra.mxu0 %v64
    %357 = vmatpush.msra.mxu0 %v63
    %358 = vmatpush.msra.mxu0 %v62
    %359 = vmatmul.f32.gmra.mxu0 %v341
    %v360 = vpop.f32.mrf.mxu0
    %v361 = vadd.f32 0.0, %v360
    %362 = vdwg.mxu0
    %v363 = vadd.f32 %v60, %v361
    %v364 = vxor.u32 %v363, 2147483648
    %v365 = vmul.f32 %v364, 1.442695
    %v366 = vpow.pop %v365
    %v367 = vadd.f32 %v366, 1.0
    %v368 = vrcp.pop %v367
    %v369 = vmul.f32 %v367, %v368
    %v370 = vsub.f32 1.0, %v369
    %v371 = vmul.f32 %v368, %v370
    %v372 = vadd.f32 %v368, %v371
    %vm373 = vweird.f32 %v367
    %vm374 = vweird.f32 %v368
    %vm375 = vmor %vm373, %vm374
    %v376 = vsel %vm375, %v368, %v372
    %v377 = vand.u32 2147483647, %v367
    %vm378 = vcmp.eq.f32.partialorder %v377, 8.507059e+37
    %v379 = vand.u32 %v367, 2147483648
    %v380 = vor.u32 1.1754944e-38, %v379
    %v381 = vsel %vm378, %v380, %v376
    %v382 = vmul.f32 1.0, %v381
    %v383 = vtanh.pop %v363
    %v385 = vrot.slane %v330, 6
    %v387 = vmul.f32 %v382, %v385
    %389 = vrot.lane.b32.xlu0 %v383, 64
    %v390 = vpop.permute.xlu0 %389
    %v392 = vmul.f32 %v382, %v390
    %394 = vrot.lane.b32.xlu0 %v392, 32
    %v395 = vpop.permute.xlu0 %394
    %v397 = vadd.f32 %v387, %v395
    %v398 = vtanh.pop %v397
    %400 = vrot.lane.b32.xlu0 %v398, 64
    %v401 = vpop.permute.xlu0 %400
    %v403 = vmul.f32 %v382, %v401
    %405 = vrot.lane.b32.xlu0 %v403, 32
    %v406 = vpop.permute.xlu0 %405
    %v407 = vsel %vm66, %v406, 0
    %409 = vmatpush.msra.mxu0 0.0
    %410 = vmatpush.msra.mxu0 0.0
    %411 = vmatpush.msra.mxu0 0.0
    %412 = vmatpush.msra.mxu0 0.0
    %413 = vmatpush.msra.mxu0 0.0
    %414 = vmatpush.msra.mxu0 0.0
    %415 = vmatpush.msra.mxu0 0.0
    %416 = vmatpush.msra.mxu0 0.0
    %417 = vmatpush.msra.mxu0 0.0
    %418 = vmatpush.msra.mxu0 0.0
    %419 = vmatpush.msra.mxu0 0.0
    %420 = vmatpush.msra.mxu0 0.0
    %421 = vmatpush.msra.mxu0 %v65
    %422 = vmatpush.msra.mxu0 %v64
    %423 = vmatpush.msra.mxu0 %v63
    %424 = vmatpush.msra.mxu0 %v62
    %425 = vmatmul.f32.gmra.mxu0 %v407
    %v426 = vpop.f32.mrf.mxu0
    %v427 = vadd.f32 0.0, %v426
    %428 = vdwg.mxu0
    %v430 = vrot.slane %v427, 6
    %v432 = vadd.f32 %v60, %v430
    %v433 = vxor.u32 %v432, 2147483648
    %v434 = vmul.f32 %v433, 1.442695
    %v435 = vpow.pop %v434
    %v436 = vadd.f32 %v435, 1.0
    %v437 = vrcp.pop %v436
    %v438 = vmul.f32 %v436, %v437
    %v439 = vsub.f32 1.0, %v438
    %v440 = vmul.f32 %v437, %v439
    %v441 = vadd.f32 %v437, %v440
    %vm442 = vweird.f32 %v436
    %vm443 = vweird.f32 %v437
    %vm444 = vmor %vm442, %vm443
    %v445 = vsel %vm444, %v437, %v441
    %v446 = vand.u32 2147483647, %v436
    %vm447 = vcmp.eq.f32.partialorder %v446, 8.507059e+37
    %v448 = vand.u32 %v436, 2147483648
    %v449 = vor.u32 1.1754944e-38, %v448
    %v450 = vsel %vm447, %v449, %v445
    %v451 = vmul.f32 1.0, %v450
    %v452 = vtanh.pop %v432
    %v454 = vrot.slane %v397, 6
    %v456 = vmul.f32 %v451, %v454
    %458 = vrot.lane.b32.xlu0 %v452, 64
    %v459 = vpop.permute.xlu0 %458
    %v461 = vmul.f32 %v451, %v459
    %463 = vrot.lane.b32.xlu0 %v461, 32
    %v464 = vpop.permute.xlu0 %463
    %v466 = vadd.f32 %v456, %v464
    %v467 = vtanh.pop %v466
    %469 = vrot.lane.b32.xlu0 %v467, 64
    %v470 = vpop.permute.xlu0 %469
    %v472 = vmul.f32 %v451, %v470
    %v474 = vrot.slane %v472, 2
    %475 = vrot.lane.b32.xlu0 %v474, 32
    %v476 = vpop.permute.xlu0 %475
    %v477 = vsel %vm66, %v476, 0
    %479 = vmatpush.msra.mxu0 0.0
    %480 = vmatpush.msra.mxu0 0.0
    %481 = vmatpush.msra.mxu0 0.0
    %482 = vmatpush.msra.mxu0 0.0
    %483 = vmatpush.msra.mxu0 0.0
    %484 = vmatpush.msra.mxu0 0.0
    %485 = vmatpush.msra.mxu0 0.0
    %486 = vmatpush.msra.mxu0 0.0
    %487 = vmatpush.msra.mxu0 0.0
    %488 = vmatpush.msra.mxu0 0.0
    %489 = vmatpush.msra.mxu0 0.0
    %490 = vmatpush.msra.mxu0 0.0
    %491 = vmatpush.msra.mxu0 %v65
    %492 = vmatpush.msra.mxu0 %v64
    %493 = vmatpush.msra.mxu0 %v63
    %494 = vmatpush.msra.mxu0 %v62
    %495 = vmatmul.f32.gmra.mxu0 %v477
    %v496 = vpop.f32.mrf.mxu0
    %v497 = vadd.f32 0.0, %v496
    %498 = vdwg.mxu0
    %v500 = vrot.slane %v497, 4
    %v502 = vadd.f32 %v60, %v500
    %v503 = vxor.u32 %v502, 2147483648
    %v504 = vmul.f32 %v503, 1.442695
    %v505 = vpow.pop %v504
    %v506 = vadd.f32 %v505, 1.0
    %v507 = vrcp.pop %v506
    %v508 = vmul.f32 %v506, %v507
    %v509 = vsub.f32 1.0, %v508
    %v510 = vmul.f32 %v507, %v509
    %v511 = vadd.f32 %v507, %v510
    %vm512 = vweird.f32 %v506
    %vm513 = vweird.f32 %v507
    %vm514 = vmor %vm512, %vm513
    %v515 = vsel %vm514, %v507, %v511
    %v516 = vand.u32 2147483647, %v506
    %vm517 = vcmp.eq.f32.partialorder %v516, 8.507059e+37
    %v518 = vand.u32 %v506, 2147483648
    %v519 = vor.u32 1.1754944e-38, %v518
    %v520 = vsel %vm517, %v519, %v515
    %v521 = vmul.f32 1.0, %v520
    %v522 = vtanh.pop %v502
    %v524 = vrot.slane %v466, 6
    %v526 = vmul.f32 %v521, %v524
    %528 = vrot.lane.b32.xlu0 %v522, 64
    %v529 = vpop.permute.xlu0 %528
    %v531 = vmul.f32 %v521, %v529
    %533 = vrot.lane.b32.xlu0 %v531, 32
    %v534 = vpop.permute.xlu0 %533
    %v536 = vadd.f32 %v526, %v534
    %v537 = vtanh.pop %v536
    %539 = vrot.lane.b32.xlu0 %v537, 64
    %v540 = vpop.permute.xlu0 %539
    %v542 = vmul.f32 %v521, %v540
    %v544 = vrot.slane %v542, 4
    %545 = vrot.lane.b32.xlu0 %v544, 32
    %v546 = vpop.permute.xlu0 %545
    %v547 = vsel %vm66, %v546, 0
    %549 = vmatpush.msra.mxu0 0.0
    %550 = vmatpush.msra.mxu0 0.0
    %551 = vmatpush.msra.mxu0 0.0
    %552 = vmatpush.msra.mxu0 0.0
    %553 = vmatpush.msra.mxu0 0.0
    %554 = vmatpush.msra.mxu0 0.0
    %555 = vmatpush.msra.mxu0 0.0
    %556 = vmatpush.msra.mxu0 0.0
    %557 = vmatpush.msra.mxu0 0.0
    %558 = vmatpush.msra.mxu0 0.0
    %559 = vmatpush.msra.mxu0 0.0
    %560 = vmatpush.msra.mxu0 0.0
    %561 = vmatpush.msra.mxu0 %v65
    %562 = vmatpush.msra.mxu0 %v64
    %563 = vmatpush.msra.mxu0 %v63
    %564 = vmatpush.msra.mxu0 %v62
    %565 = vmatmul.f32.gmra.mxu0 %v547
    %v566 = vpop.f32.mrf.mxu0
    %v567 = vadd.f32 0.0, %v566
    %568 = vdwg.mxu0
    %v570 = vrot.slane %v567, 2
    %v572 = vadd.f32 %v60, %v570
    %v573 = vxor.u32 %v572, 2147483648
    %v574 = vmul.f32 %v573, 1.442695
    %v575 = vpow.pop %v574
    %v576 = vadd.f32 %v575, 1.0
    %v577 = vrcp.pop %v576
    %v578 = vmul.f32 %v576, %v577
    %v579 = vsub.f32 1.0, %v578
    %v580 = vmul.f32 %v577, %v579
    %v581 = vadd.f32 %v577, %v580
    %vm582 = vweird.f32 %v576
    %vm583 = vweird.f32 %v577
    %vm584 = vmor %vm582, %vm583
    %v585 = vsel %vm584, %v577, %v581
    %v586 = vand.u32 2147483647, %v576
    %vm587 = vcmp.eq.f32.partialorder %v586, 8.507059e+37
    %v588 = vand.u32 %v576, 2147483648
    %v589 = vor.u32 1.1754944e-38, %v588
    %v590 = vsel %vm587, %v589, %v585
    %v591 = vmul.f32 1.0, %v590
    %v592 = vtanh.pop %v572
    %v594 = vrot.slane %v536, 6
    %v596 = vmul.f32 %v591, %v594
    %598 = vrot.lane.b32.xlu0 %v592, 64
    %v599 = vpop.permute.xlu0 %598
    %v601 = vmul.f32 %v591, %v599
    %603 = vrot.lane.b32.xlu0 %v601, 32
    %v604 = vpop.permute.xlu0 %603
    %v606 = vadd.f32 %v596, %v604
    %v607 = vtanh.pop %v606
    %609 = vrot.lane.b32.xlu0 %v607, 64
    %v610 = vpop.permute.xlu0 %609
    %v612 = vmul.f32 %v591, %v610
    %v613 = vld [vmem:[%s4] sm:$0xff]
    %v614 = vld [vmem:[%s4 + $0x8] sm:$0xff]
    %v615 = vld [vmem:[%s4 + $0x10] sm:$0xff]
    %v616 = vld [vmem:[%s4 + $0x18] sm:$0xff]
    %v617 = vld [vmem:[%s5] sm:$0x1]
    %v619 = vperm.slane %v617, 0
    %v622 = vrot.slane %v612, 6
    %623 = vrot.lane.b32.xlu0 %v622, 32
    %v624 = vpop.permute.xlu0 %623
    %v625 = vsel %vm66, %v624, 0
    %627 = vmatpush.msra.mxu0 0.0
    %628 = vmatpush.msra.mxu0 0.0
    %629 = vmatpush.msra.mxu0 0.0
    %630 = vmatpush.msra.mxu0 0.0
    %631 = vmatpush.msra.mxu0 0.0
    %632 = vmatpush.msra.mxu0 0.0
    %633 = vmatpush.msra.mxu0 0.0
    %634 = vmatpush.msra.mxu0 0.0
    %635 = vmatpush.msra.mxu0 0.0
    %636 = vmatpush.msra.mxu0 0.0
    %637 = vmatpush.msra.mxu0 0.0
    %638 = vmatpush.msra.mxu0 0.0
    %639 = vmatpush.msra.mxu0 %v616
    %640 = vmatpush.msra.mxu0 %v615
    %641 = vmatpush.msra.mxu0 %v614
    %642 = vmatpush.msra.mxu0 %v613
    %643 = vmatmul.f32.gmra.mxu0 %v625
    %v644 = vpop.f32.mrf.mxu0
    %v645 = vadd.f32 %v619, %v644
    %646 = vdwg.mxu0
    %vm647 = vcmask 58368
    %648 = vst.msk [vmem:[#allocation2] sm:$0x3] %vm647, %v645
    // Predicated region
    $region26: #{lstm_forward.1} parent=1 // pred_check
      _
    $region27: #{lstm_forward.1} parent=1 // pred_check_branch
      %650 = sbr.rel (0) target = $region29
    $region28: #{lstm_forward.1} parent=1 // pred_region
      %652 = vsyncadd [#allocation3], 0
      %s654 = sshll.u32 [#allocation2], 4
      %s655 = int_to_ptr.vmem [resolvable:$true] %s654
      %s656 = sshll.u32 %s6, 4
      %s657 = int_to_ptr.hbm [resolvable:$true] %s656
      %659 = dma.vmem_to_hbm [thread:$0]  %s655, 32, %s657, [#allocation3]
    $region29: #{lstm_forward.1} parent=1 // pred_fallthru
      _
    // Predicated region
    $region30: #{lstm_forward.1} parent=1 // pred_check
      _
    $region31: #{lstm_forward.1} parent=1 // pred_check_branch
      %661 = sbr.rel (0) target = $region33
    $region32: #{lstm_forward.1} parent=1 // pred_region
      %663 = dma.done [#allocation3], 32
    $region33: #{lstm_forward.1} parent=1 // pred_fallthru
      _
    %664 = vsyncpa [#allocation3], 1

</llo_original>
